<compile_context>
chip_gen: v6e
topology: v6e:2x2x1
jax: 0.10.0
libtpu: 0.0.40
codegen_flags: <defaults>
</compile_context>

<pallas_src>
import numpy as np

import jax
import jax.numpy as jnp
from jax.experimental import pallas as pl
from jax.experimental.pallas import tpu as pltpu


def _round_up(x, m):
    return ((x + m - 1) // m) * m


# ----------------------------- kernel -----------------------------

def vit_output_kernel(hs_ref, inp_ref, w_ref, b_ref, out_ref):
    # hs_ref : (TM, I)  intermediate activations (cast to MXU dtype in-VMEM)
    # inp_ref: (TM, H)  residual input
    # w_ref  : (I,  H)  dense weight, pre-transposed at init (contraction on sublanes)
    # b_ref  : (1,  H)  dense bias (f32)
    # out_ref: (TM, H)
    a = hs_ref[...].astype(w_ref.dtype)                       # in-VMEM cast, no HBM pass
    acc = jnp.dot(a, w_ref[...], preferred_element_type=jnp.float32)
    acc = acc + b_ref[...] + inp_ref[...].astype(jnp.float32)  # bias + residual in f32
    # Dropout is identity at inference.
    # TODO(synk): training-mode dropout would need pltpu.prng_seed/prng_random_bits masking.
    out_ref[...] = acc.astype(out_ref.dtype)


# ----------------------------- init-time param prep -----------------------------

def prepare_vit_output_params(weight, bias, matmul_dtype=jnp.bfloat16):
    """One-time (model init) prep of nn.Linear params.

    (H, I) torch layout -> (I, H) MXU-friendly layout, cast to the MXU operand
    dtype (bf16 by default).  Doing this once keeps the per-forward hot path
    free of a full extra read+write of the weight slab.
    """
    w_io = jnp.asarray(weight).T.astype(matmul_dtype)            # (I, H)
    b_row = jnp.asarray(bias, dtype=jnp.float32).reshape(1, -1)  # (1, H)
    return w_io, b_row


# ----------------------------- wrapper -----------------------------

def vit_output(hidden_states, input_tensor, w_io, b_row, *,
               block_rows=512, out_dtype=None):
    """Fused ViTOutput forward: dense(hs) + bias (+ dropout=id) + residual.

    hidden_states: (B, S, I)  activations from ViTIntermediate (any float dtype)
    input_tensor : (B, S, H)  residual stream
    w_io         : (I, H)     prepared weight (see prepare_vit_output_params)
    b_row        : (1, H)     f32 bias row
    returns      : (B, S, H)  in out_dtype (defaults to input_tensor.dtype)
    """
    B, S, I = hidden_states.shape
    H = input_tensor.shape[-1]
    M = B * S
    if out_dtype is None:
        out_dtype = input_tensor.dtype
    out_dtype = np.dtype(out_dtype)

    # Flatten batch+seq (pure reshape, no dtype change -> no extra HBM pass).
    hs2 = hidden_states.reshape(M, I)
    in2 = input_tensor.reshape(M, H)

    # Row tile: as large as possible (mem-bound op), but small enough that the
    # grid has >= 2 "parallel" steps so both v7x TensorCores get work.
    if M > block_rows:
        tm = block_rows
    else:
        tm = min(block_rows, max(8, _round_up(pl.cdiv(M, 2), 8)))
    tm = min(tm, _round_up(M, 8))
    grid = (pl.cdiv(M, tm),)

    hs_b = hs2.dtype.itemsize
    in_b = in2.dtype.itemsize
    w_b = w_io.dtype.itemsize
    out_b = out_dtype.itemsize

    # VMEM budget: resident (single-buffered) weight/bias + double-buffered row
    # tiles + f32 accumulator headroom.  Clamp to [32 MiB, 64 MiB] (safe on
    # v5e/v6e 128 MiB physical and v7x 64 MiB physical).
    vmem_est = (I * H * w_b + H * 4
                + 2 * tm * I * hs_b
                + 2 * tm * H * in_b
                + 2 * tm * H * out_b
                + tm * H * 4)
    vmem_limit = int(min(max(32 << 20, int(1.75 * vmem_est)), 64 << 20))

    cost = pl.CostEstimate(
        flops=2 * M * I * H + 2 * M * H,
        transcendentals=0,
        bytes_accessed=(M * I * hs_b + M * H * in_b + I * H * w_b + H * 4
                        + M * H * out_b),
    )

    # Alias the residual input buffer to the output (same shape/dtype required).
    alias = {1: 0} if in2.dtype == out_dtype else {}

    def call(single_buffer_weights):
        const_kw = (dict(pipeline_mode=pl.Buffered(1))
                    if single_buffer_weights else {})
        return pl.pallas_call(
            vit_output_kernel,
            out_shape=jax.ShapeDtypeStruct((M, H), out_dtype),
            grid=grid,
            in_specs=[
                pl.BlockSpec((tm, I), lambda i: (i, 0)),              # activations
                pl.BlockSpec((tm, H), lambda i: (i, 0)),              # residual
                pl.BlockSpec((I, H), lambda i: (0, 0), **const_kw),   # weight (resident)
                pl.BlockSpec((1, H), lambda i: (0, 0), **const_kw),   # bias   (resident)
            ],
            out_specs=pl.BlockSpec((tm, H), lambda i: (i, 0)),
            input_output_aliases=alias,
            compiler_params=pltpu.CompilerParams(
                dimension_semantics=("parallel",),
                vmem_limit_bytes=vmem_limit,
            ),
            cost_estimate=cost,
        )(hs2, in2, w_io, b_row)

    try:
        out = call(True)
    except Exception:
        # Fallback for jax versions without per-BlockSpec pipeline_mode /
        # Buffered(1): identical kernel with default (double) buffering.
        out = call(False)

    return out.reshape(B, S, H)


# ----------------------------- reference -----------------------------

def ref_vit_output(hidden_states, input_tensor, weight, bias):
    y = jnp.einsum("bsi,hi->bsh", hidden_states, weight,
                   precision=jax.lax.Precision.HIGHEST)
    return y + bias + input_tensor


# ----------------------------- main -----------------------------

if __name__ == "__main__":
    class Config:
        hidden_size = 32
        intermediate_size = 64
        hidden_dropout_prob = 0.0   # inference -> dropout is identity

    cfg = Config()
    B, S = 2, 8
    key = jax.random.PRNGKey(0)
    k_hs, k_in, k_w, k_b = jax.random.split(key, 4)

    hidden_states = jax.random.normal(
        k_hs, (B, S, cfg.intermediate_size), dtype=jnp.float32)
    input_tensor = jax.random.normal(
        k_in, (B, S, cfg.hidden_size), dtype=jnp.float32)
    weight = 0.02 * jax.random.normal(
        k_w, (cfg.hidden_size, cfg.intermediate_size), dtype=jnp.float32)
    bias = 0.02 * jax.random.normal(k_b, (cfg.hidden_size,), dtype=jnp.float32)

    ref = ref_vit_output(hidden_states, input_tensor, weight, bias)

    # Default path: bf16 MXU operands, f32 accumulation (native rate everywhere).
    w_bf16, b_row = prepare_vit_output_params(weight, bias)          # init-time, not per-forward
    out = jax.block_until_ready(vit_output(hidden_states, input_tensor, w_bf16, b_row))
    assert out.shape == (B, S, cfg.hidden_size) and out.dtype == jnp.float32
    assert jnp.allclose(out, ref, atol=2e-2, rtol=2e-2)

    # f32 operand path: near-exact vs the high-precision reference.
    w_f32, _ = prepare_vit_output_params(weight, bias, matmul_dtype=jnp.float32)
    out_f32 = jax.block_until_ready(vit_output(hidden_states, input_tensor, w_f32, b_row))
    assert jnp.allclose(out_f32, ref, atol=2e-4, rtol=2e-4)

    # Moderate shapes: multi-step grid, ragged last row tile (M=394), lane-dense
    # (multiple-of-128) output features -- exercises the real tiling/masking paths.
    B2, S2, I2, H2 = 2, 197, 512, 256
    k1, k2, k3, k4 = jax.random.split(jax.random.PRNGKey(1), 4)
    hs_m = jax.random.normal(k1, (B2, S2, I2), dtype=jnp.float32)
    in_m = jax.random.normal(k2, (B2, S2, H2), dtype=jnp.float32)
    w_m = 0.02 * jax.random.normal(k3, (H2, I2), dtype=jnp.float32)
    b_m = 0.02 * jax.random.normal(k4, (H2,), dtype=jnp.float32)
    ref_m = ref_vit_output(hs_m, in_m, w_m, b_m)
    w_mp, b_mp = prepare_vit_output_params(w_m, b_m)
    out_m = jax.block_until_ready(vit_output(hs_m, in_m, w_mp, b_mp))
    assert out_m.shape == (B2, S2, H2)
    assert jnp.allclose(out_m, ref_m, atol=3e-2, rtol=3e-2)

    print("KERNEL_OK")
</pallas_src>

<mosaic_0001>
module attributes {stable_mosaic.version = 11 : i64} {
  func.func @vit_output_kernel(%arg0: i32, %arg1: memref<8x64xf32, #tpu.memory_space<vmem>>, %arg2: memref<8x32xf32, #tpu.memory_space<vmem>>, %arg3: memref<64x32xbf16, #tpu.memory_space<vmem>>, %arg4: memref<1x32xf32, #tpu.memory_space<vmem>>, %arg5: memref<8x32xf32, #tpu.memory_space<vmem>>) attributes {dimension_semantics = [#tpu.dimension_semantics<parallel>], iteration_bounds = array<i64: 2>, scalar_prefetch = 0 : i64, scratch_operands = 0 : i64, tpu.core_type = #tpu.core_type<tc>, window_params = [{transform_indices = @transform_0, window_bounds = array<i64: 8, 64>}, {transform_indices = @transform_1, window_bounds = array<i64: 8, 32>}, {pipeline_mode = #tpu.pipeline_mode<synchronous>, transform_indices = @transform_2, window_bounds = array<i64: 64, 32>}, {pipeline_mode = #tpu.pipeline_mode<synchronous>, transform_indices = @transform_3, window_bounds = array<i64: 1, 32>}, {transform_indices = @transform_4, window_bounds = array<i64: 8, 32>}]} {
    %c0 = arith.constant 0 : index
    %c0_0 = arith.constant 0 : index
    %0 = vector.load %arg1[%c0, %c0_0] : memref<8x64xf32, #tpu.memory_space<vmem>>, vector<8x64xf32>
    %1 = arith.truncf %0 : vector<8x64xf32> to vector<8x64xbf16>
    %c0_1 = arith.constant 0 : index
    %c0_2 = arith.constant 0 : index
    %2 = vector.load %arg3[%c0_1, %c0_2] : memref<64x32xbf16, #tpu.memory_space<vmem>>, vector<64x32xbf16>
    %cst = arith.constant dense<0.000000e+00> : vector<8x32xf32>
    %3 = tpu.matmul %1, %2, %cst {dimension_numbers = #tpu.dot_dimension_numbers<[1], [0], [0], [1], [0, 0, 1, 1], [], []>} : vector<8x64xbf16>, vector<64x32xbf16>, vector<8x32xf32> -> vector<8x32xf32>
    %c0_3 = arith.constant 0 : index
    %c0_4 = arith.constant 0 : index
    %4 = vector.load %arg4[%c0_3, %c0_4] : memref<1x32xf32, #tpu.memory_space<vmem>>, vector<1x32xf32>
    %5 = vector.broadcast %4 : vector<1x32xf32> to vector<8x32xf32>
    %6 = arith.addf %3, %5 : vector<8x32xf32>
    %c0_5 = arith.constant 0 : index
    %c0_6 = arith.constant 0 : index
    %7 = vector.load %arg2[%c0_5, %c0_6] : memref<8x32xf32, #tpu.memory_space<vmem>>, vector<8x32xf32>
    %8 = arith.addf %6, %7 : vector<8x32xf32>
    %c0_7 = arith.constant 0 : index
    %c0_8 = arith.constant 0 : index
    %9 = vector.load %arg5[%c0_7, %c0_8] : memref<8x32xf32, #tpu.memory_space<vmem>>, vector<8x32xf32>
    tpu.vector_store %arg5[%c0_7, %c0_8], %8 {strides = array<i32>} : memref<8x32xf32, #tpu.memory_space<vmem>>, vector<8x32xf32>,
    return
  }
  func.func @transform_0(%arg0: i32) -> (i32, i32) {
    %c0_i32 = arith.constant 0 : i32
    %c0_i32_0 = arith.constant 0 : i32
    return %arg0, %c0_i32 : i32, i32
  }
  func.func @transform_1(%arg0: i32) -> (i32, i32) {
    %c0_i32 = arith.constant 0 : i32
    %c0_i32_0 = arith.constant 0 : i32
    return %arg0, %c0_i32 : i32, i32
  }
  func.func @transform_2(%arg0: i32) -> (i32, i32) {
    %c0_i32 = arith.constant 0 : i32
    %c0_i32_0 = arith.constant 0 : i32
    %c0_i32_1 = arith.constant 0 : i32
    return %c0_i32, %c0_i32_0 : i32, i32
  }
  func.func @transform_3(%arg0: i32) -> (i32, i32) {
    %c0_i32 = arith.constant 0 : i32
    %c0_i32_0 = arith.constant 0 : i32
    %c0_i32_1 = arith.constant 0 : i32
    return %c0_i32, %c0_i32_0 : i32, i32
  }
  func.func @transform_4(%arg0: i32) -> (i32, i32) {
    %c0_i32 = arith.constant 0 : i32
    %c0_i32_0 = arith.constant 0 : i32
    return %arg0, %c0_i32 : i32, i32
  }
}

module attributes {stable_mosaic.version = 11 : i64} {
  func.func @vit_output_kernel(%arg0: i32, %arg1: memref<8x64xf32, #tpu.memory_space<vmem>>, %arg2: memref<8x32xf32, #tpu.memory_space<vmem>>, %arg3: memref<64x32xbf16, #tpu.memory_space<vmem>>, %arg4: memref<1x32xf32, #tpu.memory_space<vmem>>, %arg5: memref<8x32xf32, #tpu.memory_space<vmem>>) attributes {dimension_semantics = [#tpu.dimension_semantics<parallel>], iteration_bounds = array<i64: 2>, scalar_prefetch = 0 : i64, scratch_operands = 0 : i64, tpu.core_type = #tpu.core_type<tc>, window_params = [{transform_indices = @transform_0, window_bounds = array<i64: 8, 64>}, {transform_indices = @transform_1, window_bounds = array<i64: 8, 32>}, {pipeline_mode = #tpu.pipeline_mode<synchronous>, transform_indices = @transform_2, window_bounds = array<i64: 64, 32>}, {pipeline_mode = #tpu.pipeline_mode<synchronous>, transform_indices = @transform_3, window_bounds = array<i64: 1, 32>}, {transform_indices = @transform_4, window_bounds = array<i64: 8, 32>}]} {
    %c0 = arith.constant 0 : index
    %c0_0 = arith.constant 0 : index
    %0 = vector.load %arg1[%c0, %c0_0] : memref<8x64xf32, #tpu.memory_space<vmem>>, vector<8x64xf32>
    %1 = arith.truncf %0 : vector<8x64xf32> to vector<8x64xbf16>
    %c0_1 = arith.constant 0 : index
    %c0_2 = arith.constant 0 : index
    %2 = vector.load %arg3[%c0_1, %c0_2] : memref<64x32xbf16, #tpu.memory_space<vmem>>, vector<64x32xbf16>
    %cst = arith.constant dense<0.000000e+00> : vector<8x32xf32>
    %3 = tpu.matmul %1, %2, %cst {dimension_numbers = #tpu.dot_dimension_numbers<[1], [0], [0], [1], [0, 0, 1, 1], [], []>} : vector<8x64xbf16>, vector<64x32xbf16>, vector<8x32xf32> -> vector<8x32xf32>
    %c0_3 = arith.constant 0 : index
    %c0_4 = arith.constant 0 : index
    %4 = vector.load %arg4[%c0_3, %c0_4] : memref<1x32xf32, #tpu.memory_space<vmem>>, vector<1x32xf32>
    %5 = vector.broadcast %4 : vector<1x32xf32> to vector<8x32xf32>
    %6 = arith.addf %3, %5 : vector<8x32xf32>
    %c0_5 = arith.constant 0 : index
    %c0_6 = arith.constant 0 : index
    %7 = vector.load %arg2[%c0_5, %c0_6] : memref<8x32xf32, #tpu.memory_space<vmem>>, vector<8x32xf32>
    %8 = arith.addf %6, %7 : vector<8x32xf32>
    %c0_7 = arith.constant 0 : index
    %c0_8 = arith.constant 0 : index
    %9 = vector.load %arg5[%c0_7, %c0_8] : memref<8x32xf32, #tpu.memory_space<vmem>>, vector<8x32xf32>
    tpu.vector_store %arg5[%c0_7, %c0_8], %8 {strides = array<i32>} : memref<8x32xf32, #tpu.memory_space<vmem>>, vector<8x32xf32>,
    return
  }
  func.func @transform_0(%arg0: i32) -> (i32, i32) {
    %c0_i32 = arith.constant 0 : i32
    %c0_i32_0 = arith.constant 0 : i32
    return %arg0, %c0_i32 : i32, i32
  }
  func.func @transform_1(%arg0: i32) -> (i32, i32) {
    %c0_i32 = arith.constant 0 : i32
    %c0_i32_0 = arith.constant 0 : i32
    return %arg0, %c0_i32 : i32, i32
  }
  func.func @transform_2(%arg0: i32) -> (i32, i32) {
    %c0_i32 = arith.constant 0 : i32
    %c0_i32_0 = arith.constant 0 : i32
    %c0_i32_1 = arith.constant 0 : i32
    return %c0_i32, %c0_i32_0 : i32, i32
  }
  func.func @transform_3(%arg0: i32) -> (i32, i32) {
    %c0_i32 = arith.constant 0 : i32
    %c0_i32_0 = arith.constant 0 : i32
    %c0_i32_1 = arith.constant 0 : i32
    return %c0_i32, %c0_i32_0 : i32, i32
  }
  func.func @transform_4(%arg0: i32) -> (i32, i32) {
    %c0_i32 = arith.constant 0 : i32
    %c0_i32_0 = arith.constant 0 : i32
    return %arg0, %c0_i32 : i32, i32
  }
}

</mosaic_0001>

<llo_original>
// kernel: tpu_custom_call.1
$region0: #{tpu_custom_call.1}
  #allocation0 [shape = 'u32[]', space=smem, size = 0x4, offset = 0x4, fixed_abs, tag = 'smem constant byte address 0x4 - core index']
  #allocation1 [shape = 'u32[144,128]{1,0:T(1,128)}', space=vmem, size = 0x12000, scoped, tag = 'internal scratch']
  %s0 = inlined_call_operand.vmem [shape: f32[16,64], index: 0, kind: input, shape index: {}]
  %s1 = inlined_call_operand.hbm [shape: f32[16,32], index: 1, kind: input, shape index: {}, may-alias: {1,4}]
  %s2 = inlined_call_operand.vmem [shape: bf16[64,32], index: 2, kind: input, shape index: {}]
  %s3 = inlined_call_operand.vmem [shape: f32[1,32], index: 3, kind: input, shape index: {}]
  %s4 = inlined_call_operand.hbm [shape: f32[16,32], index: 4, kind: output, shape index: {}, may-alias: {1,4}]
  %s5 = sld [smem:[#allocation0]]
  $region53: #{tpu_custom_call.1} parent=0
    _
  %s7 = ssub.s32 1, %s5
  %s8 = scalar_select 0, %s7, %s5
  $region1: #{tpu_custom_call.1} parent=0
    #allocation2 [shape = 'u8[8192]{0}', space=vmem, size = 0x2000, scoped, tag = 'input window, operand 1']
    #allocation3 [shape = 's32[2]{0}', space=sflag, size = 0x8, scoped, tag = 'scoped memory for tpu_custom_call.1']
    #allocation4 [shape = 's32[2]{0}', space=sflag, size = 0x8, scoped, tag = 'scoped memory for tpu_custom_call.1']
    #allocation5 [shape = 'u8[8192]{0}', space=vmem, size = 0x2000, scoped, tag = 'output window, operand 0']
    %9 = vsyncpa [#allocation3], 0
    %s10 = scalar_lea.sflag [#allocation3], 1
    %11 = vsyncpa %s10, 0
    %12 = vsyncpa [#allocation4], 0
    %s13 = scalar_lea.sflag [#allocation4], 1
    %14 = vsyncpa %s13, 0
    loop: start=0, step=1, limit=4
    $region2: #{tpu_custom_call.1} parent=1 // loop_pre_header
      _
    $region3: #{tpu_custom_call.1} parent=1 // loop_header
      %s16 = sphi 0, %s20
      %p17 = scmp.ge.s32.totalorder %s16, 4
      %s26 = sphi 0, %s28
      %s29 = sphi 0, %s26
      %s30 = sphi 0, %s29
      %s46 = sphi 0, %s30
      %s52 = sphi 0, %s54
      %s55 = sphi 0, %s52
      %s56 = sphi 0, %s55
      %s72 = sphi 0, %s56
      %s76 = sphi 0, %s76
      %s78 = sphi 0, %s76
      %s79 = sphi 0, %s78
      %s93 = sphi 0, %s79
      %s97 = sphi 0, %s97
      %s99 = sphi 0, %s97
      %s100 = sphi 0, %s99
      %s114 = sphi 0, %s100
      %s120 = sphi 0, %s122
      %s123 = sphi 0, %s120
      %s124 = sphi 0, %s123
      %s140 = sphi 0, %s124
    $region4: #{tpu_custom_call.1} parent=1 // loop_header_branch
      %19 = sbr.rel (%p17) target = $region8
    $region5: #{tpu_custom_call.1} parent=1 // loop_body
      %s21 = ssub.s32 %s16, 1
      %s22 = ssub.s32 %s16, 2
      %s23 = sadd.s32 %s16, 1
      %s24 = ssub.s32 %s16, %s23
      %p25 = scmp.eq.s32.totalorder %s24, 0
      %s27 = sadd.s32 %s26, 1
      %s28 = scalar_select %p25, %s26, %s27
      %p31 = pneg %p25
      %p32 = scmp.eq.s32.totalorder %s16, 1
      %p33 = por %p31, %p32
      %p34 = scmp.ne.s32.totalorder %s26, %s29
      %p35 = scmp.eq.s32.totalorder %s16, 0
      %p36 = por %p34, %p35
      %p37 = scmp.ne.s32.totalorder %s26, %s29
      %p38 = scmp.eq.s32.totalorder %s21, 1
      %p39 = por %p37, %p38
      %p40 = scmp.ne.s32.totalorder %s29, %s30
      %p41 = scmp.eq.s32.totalorder %s21, 0
      %p42 = por %p40, %p41
      %p43 = scmp.ne.s32.totalorder %s29, %s30
      %p44 = scmp.eq.s32.totalorder %s22, 1
      %p45 = por %p43, %p44
      %p47 = scmp.ne.s32.totalorder %s30, %s46
      %p48 = scmp.eq.s32.totalorder %s22, 0
      %p49 = por %p47, %p48
      %s50 = ssub.s32 %s16, %s23
      %p51 = scmp.eq.s32.totalorder %s50, 0
      %s53 = sadd.s32 %s52, 1
      %s54 = scalar_select %p51, %s52, %s53
      %p57 = pneg %p51
      %p58 = scmp.eq.s32.totalorder %s16, 1
      %p59 = por %p57, %p58
      %p60 = scmp.ne.s32.totalorder %s52, %s55
      %p61 = scmp.eq.s32.totalorder %s16, 0
      %p62 = por %p60, %p61
      %p63 = scmp.ne.s32.totalorder %s52, %s55
      %p64 = scmp.eq.s32.totalorder %s21, 1
      %p65 = por %p63, %p64
      %p66 = scmp.ne.s32.totalorder %s55, %s56
      %p67 = scmp.eq.s32.totalorder %s21, 0
      %p68 = por %p66, %p67
      %p69 = scmp.ne.s32.totalorder %s55, %s56
      %p70 = scmp.eq.s32.totalorder %s22, 1
      %p71 = por %p69, %p70
      %p73 = scmp.ne.s32.totalorder %s56, %s72
      %p74 = scmp.eq.s32.totalorder %s22, 0
      %p75 = por %p73, %p74
      %s77 = sadd.s32 %s76, 1
      %p80 = scmp.eq.s32.totalorder %s16, 1
      %p81 = scmp.ne.s32.totalorder %s76, %s78
      %p82 = scmp.eq.s32.totalorder %s16, 0
      %p83 = por %p81, %p82
      %p84 = scmp.ne.s32.totalorder %s76, %s78
      %p85 = scmp.eq.s32.totalorder %s21, 1
      %p86 = por %p84, %p85
      %p87 = scmp.ne.s32.totalorder %s78, %s79
      %p88 = scmp.eq.s32.totalorder %s21, 0
      %p89 = por %p87, %p88
      %p90 = scmp.ne.s32.totalorder %s78, %s79
      %p91 = scmp.eq.s32.totalorder %s22, 1
      %p92 = por %p90, %p91
      %p94 = scmp.ne.s32.totalorder %s79, %s93
      %p95 = scmp.eq.s32.totalorder %s22, 0
      %p96 = por %p94, %p95
      %s98 = sadd.s32 %s97, 1
      %p101 = scmp.eq.s32.totalorder %s16, 1
      %p102 = scmp.ne.s32.totalorder %s97, %s99
      %p103 = scmp.eq.s32.totalorder %s16, 0
      %p104 = por %p102, %p103
      %p105 = scmp.ne.s32.totalorder %s97, %s99
      %p106 = scmp.eq.s32.totalorder %s21, 1
      %p107 = por %p105, %p106
      %p108 = scmp.ne.s32.totalorder %s99, %s100
      %p109 = scmp.eq.s32.totalorder %s21, 0
      %p110 = por %p108, %p109
      %p111 = scmp.ne.s32.totalorder %s99, %s100
      %p112 = scmp.eq.s32.totalorder %s22, 1
      %p113 = por %p111, %p112
      %p115 = scmp.ne.s32.totalorder %s100, %s114
      %p116 = scmp.eq.s32.totalorder %s22, 0
      %p117 = por %p115, %p116
      %s118 = ssub.s32 %s16, %s23
      %p119 = scmp.eq.s32.totalorder %s118, 0
      %s121 = sadd.s32 %s120, 1
      %s122 = scalar_select %p119, %s120, %s121
      %p125 = pneg %p119
      %p126 = scmp.eq.s32.totalorder %s16, 1
      %p127 = por %p125, %p126
      %p128 = scmp.ne.s32.totalorder %s120, %s123
      %p129 = scmp.eq.s32.totalorder %s16, 0
      %p130 = por %p128, %p129
      %p131 = scmp.ne.s32.totalorder %s120, %s123
      %p132 = scmp.eq.s32.totalorder %s21, 1
      %p133 = por %p131, %p132
      %p134 = scmp.ne.s32.totalorder %s123, %s124
      %p135 = scmp.eq.s32.totalorder %s21, 0
      %p136 = por %p134, %p135
      %p137 = scmp.ne.s32.totalorder %s123, %s124
      %p138 = scmp.eq.s32.totalorder %s22, 1
      %p139 = por %p137, %p138
      %p141 = scmp.ne.s32.totalorder %s124, %s140
      %p142 = scmp.eq.s32.totalorder %s22, 0
      %p143 = por %p141, %p142
      %p144 = scmp.le.s32.totalorder 1, %s16
      %p145 = scmp.lt.s32.totalorder %s16, 3
      %p146 = pnand %p144, %p145
      %p147 = pneg %p146
      // Predicated region
      $region9: #{tpu_custom_call.1} parent=5 // pred_check
        _
      $region10: #{tpu_custom_call.1} parent=5 // pred_check_branch
        %149 = sbr.rel (%p146) target = $region12
      $region11: #{tpu_custom_call.1} parent=5 // pred_region
        %s150 = ssub.s32 %s16, 1
        // Predicated region
        $region13: #{tpu_custom_call.1} parent=11 // pred_check
          %p151 = pneg %p89
        $region14: #{tpu_custom_call.1} parent=11 // pred_check_branch
          %153 = sbr.rel (%p151) target = $region16
        $region15: #{tpu_custom_call.1} parent=11 // pred_region
          _
        $region16: #{tpu_custom_call.1} parent=11 // pred_fallthru
          _
        // Predicated region
        $region17: #{tpu_custom_call.1} parent=11 // pred_check
          %p154 = pneg %p110
        $region18: #{tpu_custom_call.1} parent=11 // pred_check_branch
          %156 = sbr.rel (%p154) target = $region20
        $region19: #{tpu_custom_call.1} parent=11 // pred_region
          _
        $region20: #{tpu_custom_call.1} parent=11 // pred_fallthru
          _
      $region12: #{tpu_custom_call.1} parent=5 // pred_fallthru
        _
      %p157 = scmp.lt.s32.totalorder %s16, 2
      // Predicated region
      $region21: #{tpu_custom_call.1} parent=5 // pred_check
        %p158 = pneg %p157
      $region22: #{tpu_custom_call.1} parent=5 // pred_check_branch
        %160 = sbr.rel (%p158) target = $region24
      $region23: #{tpu_custom_call.1} parent=5 // pred_region
        // Predicated region
        $region25: #{tpu_custom_call.1} parent=23 // pred_check
          %p161 = pneg %p36
        $region26: #{tpu_custom_call.1} parent=23 // pred_check_branch
          %163 = sbr.rel (%p161) target = $region28
        $region27: #{tpu_custom_call.1} parent=23 // pred_region
          %p164 = scmp.lt.s32.totalorder %s16, 1
          %s165 = scalar_select %p164, %s16, 1
          %s166 = smul.addr %s165, 8
          %s167 = scalar_lea.vmem %s0, %s166
        $region28: #{tpu_custom_call.1} parent=23 // pred_fallthru
          _
        // Predicated region
        $region29: #{tpu_custom_call.1} parent=23 // pred_check
          %p168 = pneg %p62
        $region30: #{tpu_custom_call.1} parent=23 // pred_check_branch
          %170 = sbr.rel (%p168) target = $region32
        $region31: #{tpu_custom_call.1} parent=23 // pred_region
          %s171 = sand.u32 %s52, 1
          %s172 = scalar_lea.sflag [#allocation3], %s171
          %s173 = sand.u32 %s52, 1
          %s174 = smul.addr %s173, 8
          %s175 = scalar_lea.vmem [#allocation2], %s174
          %s177 = ssub.s32 128, 128
          %178 = vsyncadd %s172, %s177
          %s179 = smul.addr %s16, 128
          %s180 = scalar_lea.hbm %s1, %s179
          %s182 = sshll.u32 %s175, 4
          %s183 = int_to_ptr.vmem [resolvable:$true] %s182
          %185 = dma.hbm_to_vmem [thread:$0]  %s180, 128, %s183, %s172
        $region32: #{tpu_custom_call.1} parent=23 // pred_fallthru
          _
      $region24: #{tpu_custom_call.1} parent=5 // pred_fallthru
        _
      %p186 = scmp.le.s32.totalorder 1, %s16
      %p187 = scmp.lt.s32.totalorder %s16, 3
      %p188 = pnand %p186, %p187
      %p189 = pneg %p188
      // Predicated region
      $region33: #{tpu_custom_call.1} parent=5 // pred_check
        _
      $region34: #{tpu_custom_call.1} parent=5 // pred_check_branch
        %191 = sbr.rel (%p188) target = $region36
      $region35: #{tpu_custom_call.1} parent=5 // pred_region
        %s192 = ssub.s32 %s16, 1
        %s193 = sand.u32 %s55, 1
        %s194 = scalar_lea.sflag [#allocation3], %s193
        %s195 = sand.u32 %s55, 1
        %s196 = smul.addr %s195, 8
        %s197 = scalar_lea.vmem [#allocation2], %s196
        // Predicated region
        $region37: #{tpu_custom_call.1} parent=35 // pred_check
          %p198 = pneg %p68
        $region38: #{tpu_custom_call.1} parent=35 // pred_check_branch
          %200 = sbr.rel (%p198) target = $region40
        $region39: #{tpu_custom_call.1} parent=35 // pred_region
          %201 = dma.done %s194, 128
        $region40: #{tpu_custom_call.1} parent=35 // pred_fallthru
          _
        %p202 = scmp.lt.s32.totalorder %s21, 1
        %s203 = scalar_select %p202, %s21, 1
        %s204 = smul.addr %s203, 8
        %s205 = scalar_lea.vmem %s0, %s204
        %p206 = pneg %p42
        %p207 = pneg %p39
        %s208 = sand.u32 %s55, 1
        %s209 = scalar_lea.sflag [#allocation3], %s208
        %s210 = sand.u32 %s55, 1
        %s211 = smul.addr %s210, 8
        %s212 = scalar_lea.vmem [#allocation2], %s211
        %p213 = pneg %p68
        %p214 = pneg %p65
        %p215 = pneg %p89
        %p216 = pneg %p86
        %p217 = pneg %p110
        %p218 = pneg %p107
        %p219 = pneg %p136
        %p220 = pneg %p133
        %s221 = sand.u32 %s123, 1
        %s222 = scalar_lea.sflag [#allocation4], %s221
        %s223 = sand.u32 %s123, 1
        %s224 = smul.addr %s223, 8
        %s225 = scalar_lea.vmem [#allocation5], %s224
        %p226 = scmp.lt.s32.totalorder %s21, 1
        %s227 = scalar_select %p226, %s21, 1
        %s228 = smul.addr %s227, 8
        %s229 = scalar_lea.vmem %s0, %s228
        %v231 = vld [vmem:[%s229] sm:$0xff]
        %v232 = vpack.c.bf16 %v231, %v231
        %v233 = vld [vmem:[%s2] sm:$0xf]
        %v234 = vld [vmem:[%s2 + $0x4] sm:$0xf]
        %v235 = vld [vmem:[%s2 + $0x8] sm:$0xf]
        %v236 = vld [vmem:[%s2 + $0xc] sm:$0xf]
        %v237 = vld [vmem:[%s2 + $0x10] sm:$0xf]
        %v238 = vld [vmem:[%s2 + $0x14] sm:$0xf]
        %v239 = vld [vmem:[%s2 + $0x18] sm:$0xf]
        %v240 = vld [vmem:[%s2 + $0x1c] sm:$0xf]
        %v241 = vld [vmem:[%s3] sm:$0x1]
        %v243 = vlaneseq
        %v244 = vshrl.u32 %v243, 7
        %v245 = vsub.s32 0, %v244
        %v246 = vrot.slane %v241, %v245
        %v256 = vunpack.c.l.b16 %v233
        %v257 = vunpack.c.l.b16 %v234
        %v258 = vunpack.c.l.b16 %v235
        %v259 = vunpack.c.l.b16 %v236
        %v260 = vunpack.c.l.b16 %v237
        %v261 = vunpack.c.l.b16 %v238
        %v262 = vunpack.c.l.b16 %v239
        %v263 = vunpack.c.l.b16 %v240
        %v264 = vpack.c.b16 %v257, %v256
        %v265 = vpack.c.b16 %v259, %v258
        %v266 = vpack.c.b16 %v261, %v260
        %v267 = vpack.c.b16 %v263, %v262
        %vm272 = vcmask 523264
        %v274 = vsel %vm272, %v232, 0
        %276 = vmatprep.subr.bf16.mxu0 0
        %277 = vmatpush1.bf16.msra.mxu0 0
        %278 = vmatprep.subr.bf16.mxu0 0
        %279 = vmatpush1.bf16.msra.mxu0 0
        %280 = vmatprep.subr.bf16.mxu0 0
        %281 = vmatpush1.bf16.msra.mxu0 0
        %282 = vmatprep.subr.bf16.mxu0 0
        %283 = vmatpush1.bf16.msra.mxu0 0
        %284 = vmatprep.subr.bf16.mxu0 0
        %285 = vmatpush1.bf16.msra.mxu0 %v267
        %286 = vmatprep.subr.bf16.mxu0 0
        %287 = vmatpush1.bf16.msra.mxu0 %v266
        %288 = vmatprep.subr.bf16.mxu0 0
        %289 = vmatpush1.bf16.msra.mxu0 %v265
        %290 = vmatprep.subr.bf16.mxu0 0
        %291 = vmatpush1.bf16.msra.mxu0 %v264
        %292 = vmatprep.subr.bf16.mxu0 0
        %293 = vmatpush2.bf16.msra.mxu0 0
        %294 = vmatprep.subr.bf16.mxu0 0
        %295 = vmatpush2.bf16.msra.mxu0 0
        %296 = vmatprep.subr.bf16.mxu0 0
        %297 = vmatpush2.bf16.msra.mxu0 0
        %298 = vmatprep.subr.bf16.mxu0 0
        %299 = vmatpush2.bf16.msra.mxu0 0
        %300 = vmatprep.subr.bf16.mxu0 0
        %301 = vmatpush2.bf16.msra.mxu0 0
        %302 = vmatprep.subr.bf16.mxu0 0
        %303 = vmatpush2.bf16.msra.mxu0 0
        %304 = vmatprep.subr.bf16.mxu0 0
        %305 = vmatpush2.bf16.msra.mxu0 0
        %306 = vmatprep.subr.bf16.mxu0 0
        %307 = vmatpush2.bf16.msra.mxu0 0
        %308 = vmatprep.mubr.bf16.mxu0 0
        %309 = vmatmul.mubr.bf16.gmra.mxu0 %v274
        %v310 = vpop.f32.mrf.mxu0
        %v311 = vadd.f32 %v246, %v310
        %v312 = vpop.f32.mrf.mxu0
        %v313 = vpop.f32.mrf.mxu0
        %v314 = vpop.f32.mrf.mxu0
        %315 = vdwg.mxu0
        %v316 = vld [vmem:[%s197] sm:$0xff]
        %v317 = vadd.f32 %v311, %v316
        %vm318 = vcmask 261120
        %319 = vst.msk [vmem:[%s225] sm:$0xff] %vm318, %v317
        %s320 = sand.u32 %s123, 1
        %s321 = scalar_lea.sflag [#allocation4], %s320
        %s322 = sand.u32 %s123, 1
        %s323 = smul.addr %s322, 8
        %s324 = scalar_lea.vmem [#allocation5], %s323
        // Predicated region
        $region41: #{tpu_custom_call.1} parent=35 // pred_check
          %p325 = pneg %p133
        $region42: #{tpu_custom_call.1} parent=35 // pred_check_branch
          %327 = sbr.rel (%p325) target = $region44
        $region43: #{tpu_custom_call.1} parent=35 // pred_region
          %s329 = ssub.s32 128, 128
          %330 = vsyncadd %s321, %s329
          %s331 = smul.addr %s21, 128
          %s332 = scalar_lea.hbm %s4, %s331
          %s334 = sshll.u32 %s324, 4
          %s335 = int_to_ptr.vmem [resolvable:$true] %s334
          %337 = dma.vmem_to_hbm [thread:$0]  %s335, 128, %s332, %s321
        $region44: #{tpu_custom_call.1} parent=35 // pred_fallthru
          _
      $region36: #{tpu_custom_call.1} parent=5 // pred_fallthru
        _
      %p338 = scmp.le.s32.totalorder 2, %s16
      // Predicated region
      $region45: #{tpu_custom_call.1} parent=5 // pred_check
        %p339 = pneg %p338
      $region46: #{tpu_custom_call.1} parent=5 // pred_check_branch
        %341 = sbr.rel (%p339) target = $region48
      $region47: #{tpu_custom_call.1} parent=5 // pred_region
        %s342 = ssub.s32 %s16, 2
        // Predicated region
        $region49: #{tpu_custom_call.1} parent=47 // pred_check
          %p343 = pneg %p139
        $region50: #{tpu_custom_call.1} parent=47 // pred_check_branch
          %345 = sbr.rel (%p343) target = $region52
        $region51: #{tpu_custom_call.1} parent=47 // pred_region
          %s346 = sand.u32 %s124, 1
          %s347 = scalar_lea.sflag [#allocation4], %s346
          %s348 = sand.u32 %s124, 1
          %s349 = smul.addr %s348, 8
          %s350 = scalar_lea.vmem [#allocation5], %s349
          %351 = dma.done %s347, 128
        $region52: #{tpu_custom_call.1} parent=47 // pred_fallthru
          _
      $region48: #{tpu_custom_call.1} parent=5 // pred_fallthru
        _
    $region6: #{tpu_custom_call.1} parent=1 // loop_footer
      %s20 = sadd.s32 1, %s16
    $region7: #{tpu_custom_call.1} parent=1 // loop_footer_branch
      %15 = sbr.rel target = $region3
    $region8: #{tpu_custom_call.1} parent=1 // loop_exit
      _
    %352 = vsyncpa [#allocation3], 1
    %s353 = scalar_lea.sflag [#allocation3], 1
    %354 = vsyncpa %s353, 1
    %355 = vsyncpa [#allocation4], 1
    %s356 = scalar_lea.sflag [#allocation4], 1
    %357 = vsyncpa %s356, 1

// kernel: tpu_custom_call.1
$region0: #{tpu_custom_call.1}
  #allocation0 [shape = 'u32[]', space=smem, size = 0x4, offset = 0x4, fixed_abs, tag = 'smem constant byte address 0x4 - core index']
  #allocation1 [shape = 'u32[144,128]{1,0:T(1,128)}', space=vmem, size = 0x12000, scoped, tag = 'internal scratch']
  %s0 = inlined_call_operand.vmem [shape: f32[16,64], index: 0, kind: input, shape index: {}]
  %s1 = inlined_call_operand.hbm [shape: f32[16,32], index: 1, kind: input, shape index: {}, may-alias: {1,4}]
  %s2 = inlined_call_operand.vmem [shape: bf16[64,32], index: 2, kind: input, shape index: {}]
  %s3 = inlined_call_operand.vmem [shape: f32[1,32], index: 3, kind: input, shape index: {}]
  %s4 = inlined_call_operand.hbm [shape: f32[16,32], index: 4, kind: output, shape index: {}, may-alias: {1,4}]
  %s5 = sld [smem:[#allocation0]]
  $region53: #{tpu_custom_call.1} parent=0
    _
  %s7 = ssub.s32 1, %s5
  %s8 = scalar_select 0, %s7, %s5
  $region1: #{tpu_custom_call.1} parent=0
    #allocation2 [shape = 'u8[8192]{0}', space=vmem, size = 0x2000, scoped, tag = 'input window, operand 1']
    #allocation3 [shape = 's32[2]{0}', space=sflag, size = 0x8, scoped, tag = 'scoped memory for tpu_custom_call.1']
    #allocation4 [shape = 's32[2]{0}', space=sflag, size = 0x8, scoped, tag = 'scoped memory for tpu_custom_call.1']
    #allocation5 [shape = 'u8[8192]{0}', space=vmem, size = 0x2000, scoped, tag = 'output window, operand 0']
    %9 = vsyncpa [#allocation3], 0
    %s10 = scalar_lea.sflag [#allocation3], 1
    %11 = vsyncpa %s10, 0
    %12 = vsyncpa [#allocation4], 0
    %s13 = scalar_lea.sflag [#allocation4], 1
    %14 = vsyncpa %s13, 0
    loop: start=0, step=1, limit=4
    $region2: #{tpu_custom_call.1} parent=1 // loop_pre_header
      _
    $region3: #{tpu_custom_call.1} parent=1 // loop_header
      %s16 = sphi 0, %s20
      %p17 = scmp.ge.s32.totalorder %s16, 4
      %s26 = sphi 0, %s28
      %s29 = sphi 0, %s26
      %s30 = sphi 0, %s29
      %s46 = sphi 0, %s30
      %s52 = sphi 0, %s54
      %s55 = sphi 0, %s52
      %s56 = sphi 0, %s55
      %s72 = sphi 0, %s56
      %s76 = sphi 0, %s76
      %s78 = sphi 0, %s76
      %s79 = sphi 0, %s78
      %s93 = sphi 0, %s79
      %s97 = sphi 0, %s97
      %s99 = sphi 0, %s97
      %s100 = sphi 0, %s99
      %s114 = sphi 0, %s100
      %s120 = sphi 0, %s122
      %s123 = sphi 0, %s120
      %s124 = sphi 0, %s123
      %s140 = sphi 0, %s124
    $region4: #{tpu_custom_call.1} parent=1 // loop_header_branch
      %19 = sbr.rel (%p17) target = $region8
    $region5: #{tpu_custom_call.1} parent=1 // loop_body
      %s21 = ssub.s32 %s16, 1
      %s22 = ssub.s32 %s16, 2
      %s23 = sadd.s32 %s16, 1
      %s24 = ssub.s32 %s16, %s23
      %p25 = scmp.eq.s32.totalorder %s24, 0
      %s27 = sadd.s32 %s26, 1
      %s28 = scalar_select %p25, %s26, %s27
      %p31 = pneg %p25
      %p32 = scmp.eq.s32.totalorder %s16, 1
      %p33 = por %p31, %p32
      %p34 = scmp.ne.s32.totalorder %s26, %s29
      %p35 = scmp.eq.s32.totalorder %s16, 0
      %p36 = por %p34, %p35
      %p37 = scmp.ne.s32.totalorder %s26, %s29
      %p38 = scmp.eq.s32.totalorder %s21, 1
      %p39 = por %p37, %p38
      %p40 = scmp.ne.s32.totalorder %s29, %s30
      %p41 = scmp.eq.s32.totalorder %s21, 0
      %p42 = por %p40, %p41
      %p43 = scmp.ne.s32.totalorder %s29, %s30
      %p44 = scmp.eq.s32.totalorder %s22, 1
      %p45 = por %p43, %p44
      %p47 = scmp.ne.s32.totalorder %s30, %s46
      %p48 = scmp.eq.s32.totalorder %s22, 0
      %p49 = por %p47, %p48
      %s50 = ssub.s32 %s16, %s23
      %p51 = scmp.eq.s32.totalorder %s50, 0
      %s53 = sadd.s32 %s52, 1
      %s54 = scalar_select %p51, %s52, %s53
      %p57 = pneg %p51
      %p58 = scmp.eq.s32.totalorder %s16, 1
      %p59 = por %p57, %p58
      %p60 = scmp.ne.s32.totalorder %s52, %s55
      %p61 = scmp.eq.s32.totalorder %s16, 0
      %p62 = por %p60, %p61
      %p63 = scmp.ne.s32.totalorder %s52, %s55
      %p64 = scmp.eq.s32.totalorder %s21, 1
      %p65 = por %p63, %p64
      %p66 = scmp.ne.s32.totalorder %s55, %s56
      %p67 = scmp.eq.s32.totalorder %s21, 0
      %p68 = por %p66, %p67
      %p69 = scmp.ne.s32.totalorder %s55, %s56
      %p70 = scmp.eq.s32.totalorder %s22, 1
      %p71 = por %p69, %p70
      %p73 = scmp.ne.s32.totalorder %s56, %s72
      %p74 = scmp.eq.s32.totalorder %s22, 0
      %p75 = por %p73, %p74
      %s77 = sadd.s32 %s76, 1
      %p80 = scmp.eq.s32.totalorder %s16, 1
      %p81 = scmp.ne.s32.totalorder %s76, %s78
      %p82 = scmp.eq.s32.totalorder %s16, 0
      %p83 = por %p81, %p82
      %p84 = scmp.ne.s32.totalorder %s76, %s78
      %p85 = scmp.eq.s32.totalorder %s21, 1
      %p86 = por %p84, %p85
      %p87 = scmp.ne.s32.totalorder %s78, %s79
      %p88 = scmp.eq.s32.totalorder %s21, 0
      %p89 = por %p87, %p88
      %p90 = scmp.ne.s32.totalorder %s78, %s79
      %p91 = scmp.eq.s32.totalorder %s22, 1
      %p92 = por %p90, %p91
      %p94 = scmp.ne.s32.totalorder %s79, %s93
      %p95 = scmp.eq.s32.totalorder %s22, 0
      %p96 = por %p94, %p95
      %s98 = sadd.s32 %s97, 1
      %p101 = scmp.eq.s32.totalorder %s16, 1
      %p102 = scmp.ne.s32.totalorder %s97, %s99
      %p103 = scmp.eq.s32.totalorder %s16, 0
      %p104 = por %p102, %p103
      %p105 = scmp.ne.s32.totalorder %s97, %s99
      %p106 = scmp.eq.s32.totalorder %s21, 1
      %p107 = por %p105, %p106
      %p108 = scmp.ne.s32.totalorder %s99, %s100
      %p109 = scmp.eq.s32.totalorder %s21, 0
      %p110 = por %p108, %p109
      %p111 = scmp.ne.s32.totalorder %s99, %s100
      %p112 = scmp.eq.s32.totalorder %s22, 1
      %p113 = por %p111, %p112
      %p115 = scmp.ne.s32.totalorder %s100, %s114
      %p116 = scmp.eq.s32.totalorder %s22, 0
      %p117 = por %p115, %p116
      %s118 = ssub.s32 %s16, %s23
      %p119 = scmp.eq.s32.totalorder %s118, 0
      %s121 = sadd.s32 %s120, 1
      %s122 = scalar_select %p119, %s120, %s121
      %p125 = pneg %p119
      %p126 = scmp.eq.s32.totalorder %s16, 1
      %p127 = por %p125, %p126
      %p128 = scmp.ne.s32.totalorder %s120, %s123
      %p129 = scmp.eq.s32.totalorder %s16, 0
      %p130 = por %p128, %p129
      %p131 = scmp.ne.s32.totalorder %s120, %s123
      %p132 = scmp.eq.s32.totalorder %s21, 1
      %p133 = por %p131, %p132
      %p134 = scmp.ne.s32.totalorder %s123, %s124
      %p135 = scmp.eq.s32.totalorder %s21, 0
      %p136 = por %p134, %p135
      %p137 = scmp.ne.s32.totalorder %s123, %s124
      %p138 = scmp.eq.s32.totalorder %s22, 1
      %p139 = por %p137, %p138
      %p141 = scmp.ne.s32.totalorder %s124, %s140
      %p142 = scmp.eq.s32.totalorder %s22, 0
      %p143 = por %p141, %p142
      %p144 = scmp.le.s32.totalorder 1, %s16
      %p145 = scmp.lt.s32.totalorder %s16, 3
      %p146 = pnand %p144, %p145
      %p147 = pneg %p146
      // Predicated region
      $region9: #{tpu_custom_call.1} parent=5 // pred_check
        _
      $region10: #{tpu_custom_call.1} parent=5 // pred_check_branch
        %149 = sbr.rel (%p146) target = $region12
      $region11: #{tpu_custom_call.1} parent=5 // pred_region
        %s150 = ssub.s32 %s16, 1
        // Predicated region
        $region13: #{tpu_custom_call.1} parent=11 // pred_check
          %p151 = pneg %p89
        $region14: #{tpu_custom_call.1} parent=11 // pred_check_branch
          %153 = sbr.rel (%p151) target = $region16
        $region15: #{tpu_custom_call.1} parent=11 // pred_region
          _
        $region16: #{tpu_custom_call.1} parent=11 // pred_fallthru
          _
        // Predicated region
        $region17: #{tpu_custom_call.1} parent=11 // pred_check
          %p154 = pneg %p110
        $region18: #{tpu_custom_call.1} parent=11 // pred_check_branch
          %156 = sbr.rel (%p154) target = $region20
        $region19: #{tpu_custom_call.1} parent=11 // pred_region
          _
        $region20: #{tpu_custom_call.1} parent=11 // pred_fallthru
          _
      $region12: #{tpu_custom_call.1} parent=5 // pred_fallthru
        _
      %p157 = scmp.lt.s32.totalorder %s16, 2
      // Predicated region
      $region21: #{tpu_custom_call.1} parent=5 // pred_check
        %p158 = pneg %p157
      $region22: #{tpu_custom_call.1} parent=5 // pred_check_branch
        %160 = sbr.rel (%p158) target = $region24
      $region23: #{tpu_custom_call.1} parent=5 // pred_region
        // Predicated region
        $region25: #{tpu_custom_call.1} parent=23 // pred_check
          %p161 = pneg %p36
        $region26: #{tpu_custom_call.1} parent=23 // pred_check_branch
          %163 = sbr.rel (%p161) target = $region28
        $region27: #{tpu_custom_call.1} parent=23 // pred_region
          %p164 = scmp.lt.s32.totalorder %s16, 1
          %s165 = scalar_select %p164, %s16, 1
          %s166 = smul.addr %s165, 8
          %s167 = scalar_lea.vmem %s0, %s166
        $region28: #{tpu_custom_call.1} parent=23 // pred_fallthru
          _
        // Predicated region
        $region29: #{tpu_custom_call.1} parent=23 // pred_check
          %p168 = pneg %p62
        $region30: #{tpu_custom_call.1} parent=23 // pred_check_branch
          %170 = sbr.rel (%p168) target = $region32
        $region31: #{tpu_custom_call.1} parent=23 // pred_region
          %s171 = sand.u32 %s52, 1
          %s172 = scalar_lea.sflag [#allocation3], %s171
          %s173 = sand.u32 %s52, 1
          %s174 = smul.addr %s173, 8
          %s175 = scalar_lea.vmem [#allocation2], %s174
          %s177 = ssub.s32 128, 128
          %178 = vsyncadd %s172, %s177
          %s179 = smul.addr %s16, 128
          %s180 = scalar_lea.hbm %s1, %s179
          %s182 = sshll.u32 %s175, 4
          %s183 = int_to_ptr.vmem [resolvable:$true] %s182
          %185 = dma.hbm_to_vmem [thread:$0]  %s180, 128, %s183, %s172
        $region32: #{tpu_custom_call.1} parent=23 // pred_fallthru
          _
      $region24: #{tpu_custom_call.1} parent=5 // pred_fallthru
        _
      %p186 = scmp.le.s32.totalorder 1, %s16
      %p187 = scmp.lt.s32.totalorder %s16, 3
      %p188 = pnand %p186, %p187
      %p189 = pneg %p188
      // Predicated region
      $region33: #{tpu_custom_call.1} parent=5 // pred_check
        _
      $region34: #{tpu_custom_call.1} parent=5 // pred_check_branch
        %191 = sbr.rel (%p188) target = $region36
      $region35: #{tpu_custom_call.1} parent=5 // pred_region
        %s192 = ssub.s32 %s16, 1
        %s193 = sand.u32 %s55, 1
        %s194 = scalar_lea.sflag [#allocation3], %s193
        %s195 = sand.u32 %s55, 1
        %s196 = smul.addr %s195, 8
        %s197 = scalar_lea.vmem [#allocation2], %s196
        // Predicated region
        $region37: #{tpu_custom_call.1} parent=35 // pred_check
          %p198 = pneg %p68
        $region38: #{tpu_custom_call.1} parent=35 // pred_check_branch
          %200 = sbr.rel (%p198) target = $region40
        $region39: #{tpu_custom_call.1} parent=35 // pred_region
          %201 = dma.done %s194, 128
        $region40: #{tpu_custom_call.1} parent=35 // pred_fallthru
          _
        %p202 = scmp.lt.s32.totalorder %s21, 1
        %s203 = scalar_select %p202, %s21, 1
        %s204 = smul.addr %s203, 8
        %s205 = scalar_lea.vmem %s0, %s204
        %p206 = pneg %p42
        %p207 = pneg %p39
        %s208 = sand.u32 %s55, 1
        %s209 = scalar_lea.sflag [#allocation3], %s208
        %s210 = sand.u32 %s55, 1
        %s211 = smul.addr %s210, 8
        %s212 = scalar_lea.vmem [#allocation2], %s211
        %p213 = pneg %p68
        %p214 = pneg %p65
        %p215 = pneg %p89
        %p216 = pneg %p86
        %p217 = pneg %p110
        %p218 = pneg %p107
        %p219 = pneg %p136
        %p220 = pneg %p133
        %s221 = sand.u32 %s123, 1
        %s222 = scalar_lea.sflag [#allocation4], %s221
        %s223 = sand.u32 %s123, 1
        %s224 = smul.addr %s223, 8
        %s225 = scalar_lea.vmem [#allocation5], %s224
        %p226 = scmp.lt.s32.totalorder %s21, 1
        %s227 = scalar_select %p226, %s21, 1
        %s228 = smul.addr %s227, 8
        %s229 = scalar_lea.vmem %s0, %s228
        %v231 = vld [vmem:[%s229] sm:$0xff]
        %v232 = vpack.c.bf16 %v231, %v231
        %v233 = vld [vmem:[%s2] sm:$0xf]
        %v234 = vld [vmem:[%s2 + $0x4] sm:$0xf]
        %v235 = vld [vmem:[%s2 + $0x8] sm:$0xf]
        %v236 = vld [vmem:[%s2 + $0xc] sm:$0xf]
        %v237 = vld [vmem:[%s2 + $0x10] sm:$0xf]
        %v238 = vld [vmem:[%s2 + $0x14] sm:$0xf]
        %v239 = vld [vmem:[%s2 + $0x18] sm:$0xf]
        %v240 = vld [vmem:[%s2 + $0x1c] sm:$0xf]
        %v241 = vld [vmem:[%s3] sm:$0x1]
        %v243 = vlaneseq
        %v244 = vshrl.u32 %v243, 7
        %v245 = vsub.s32 0, %v244
        %v246 = vrot.slane %v241, %v245
        %v256 = vunpack.c.l.b16 %v233
        %v257 = vunpack.c.l.b16 %v234
        %v258 = vunpack.c.l.b16 %v235
        %v259 = vunpack.c.l.b16 %v236
        %v260 = vunpack.c.l.b16 %v237
        %v261 = vunpack.c.l.b16 %v238
        %v262 = vunpack.c.l.b16 %v239
        %v263 = vunpack.c.l.b16 %v240
        %v264 = vpack.c.b16 %v257, %v256
        %v265 = vpack.c.b16 %v259, %v258
        %v266 = vpack.c.b16 %v261, %v260
        %v267 = vpack.c.b16 %v263, %v262
        %vm272 = vcmask 523264
        %v274 = vsel %vm272, %v232, 0
        %276 = vmatprep.subr.bf16.mxu0 0
        %277 = vmatpush1.bf16.msra.mxu0 0
        %278 = vmatprep.subr.bf16.mxu0 0
        %279 = vmatpush1.bf16.msra.mxu0 0
        %280 = vmatprep.subr.bf16.mxu0 0
        %281 = vmatpush1.bf16.msra.mxu0 0
        %282 = vmatprep.subr.bf16.mxu0 0
        %283 = vmatpush1.bf16.msra.mxu0 0
        %284 = vmatprep.subr.bf16.mxu0 0
        %285 = vmatpush1.bf16.msra.mxu0 %v267
        %286 = vmatprep.subr.bf16.mxu0 0
        %287 = vmatpush1.bf16.msra.mxu0 %v266
        %288 = vmatprep.subr.bf16.mxu0 0
        %289 = vmatpush1.bf16.msra.mxu0 %v265
        %290 = vmatprep.subr.bf16.mxu0 0
        %291 = vmatpush1.bf16.msra.mxu0 %v264
        %292 = vmatprep.subr.bf16.mxu0 0
        %293 = vmatpush2.bf16.msra.mxu0 0
        %294 = vmatprep.subr.bf16.mxu0 0
        %295 = vmatpush2.bf16.msra.mxu0 0
        %296 = vmatprep.subr.bf16.mxu0 0
        %297 = vmatpush2.bf16.msra.mxu0 0
        %298 = vmatprep.subr.bf16.mxu0 0
        %299 = vmatpush2.bf16.msra.mxu0 0
        %300 = vmatprep.subr.bf16.mxu0 0
        %301 = vmatpush2.bf16.msra.mxu0 0
        %302 = vmatprep.subr.bf16.mxu0 0
        %303 = vmatpush2.bf16.msra.mxu0 0
        %304 = vmatprep.subr.bf16.mxu0 0
        %305 = vmatpush2.bf16.msra.mxu0 0
        %306 = vmatprep.subr.bf16.mxu0 0
        %307 = vmatpush2.bf16.msra.mxu0 0
        %308 = vmatprep.mubr.bf16.mxu0 0
        %309 = vmatmul.mubr.bf16.gmra.mxu0 %v274
        %v310 = vpop.f32.mrf.mxu0
        %v311 = vadd.f32 %v246, %v310
        %v312 = vpop.f32.mrf.mxu0
        %v313 = vpop.f32.mrf.mxu0
        %v314 = vpop.f32.mrf.mxu0
        %315 = vdwg.mxu0
        %v316 = vld [vmem:[%s197] sm:$0xff]
        %v317 = vadd.f32 %v311, %v316
        %vm318 = vcmask 261120
        %319 = vst.msk [vmem:[%s225] sm:$0xff] %vm318, %v317
        %s320 = sand.u32 %s123, 1
        %s321 = scalar_lea.sflag [#allocation4], %s320
        %s322 = sand.u32 %s123, 1
        %s323 = smul.addr %s322, 8
        %s324 = scalar_lea.vmem [#allocation5], %s323
        // Predicated region
        $region41: #{tpu_custom_call.1} parent=35 // pred_check
          %p325 = pneg %p133
        $region42: #{tpu_custom_call.1} parent=35 // pred_check_branch
          %327 = sbr.rel (%p325) target = $region44
        $region43: #{tpu_custom_call.1} parent=35 // pred_region
          %s329 = ssub.s32 128, 128
          %330 = vsyncadd %s321, %s329
          %s331 = smul.addr %s21, 128
          %s332 = scalar_lea.hbm %s4, %s331
          %s334 = sshll.u32 %s324, 4
          %s335 = int_to_ptr.vmem [resolvable:$true] %s334
          %337 = dma.vmem_to_hbm [thread:$0]  %s335, 128, %s332, %s321
        $region44: #{tpu_custom_call.1} parent=35 // pred_fallthru
          _
      $region36: #{tpu_custom_call.1} parent=5 // pred_fallthru
        _
      %p338 = scmp.le.s32.totalorder 2, %s16
      // Predicated region
      $region45: #{tpu_custom_call.1} parent=5 // pred_check
        %p339 = pneg %p338
      $region46: #{tpu_custom_call.1} parent=5 // pred_check_branch
        %341 = sbr.rel (%p339) target = $region48
      $region47: #{tpu_custom_call.1} parent=5 // pred_region
        %s342 = ssub.s32 %s16, 2
        // Predicated region
        $region49: #{tpu_custom_call.1} parent=47 // pred_check
          %p343 = pneg %p139
        $region50: #{tpu_custom_call.1} parent=47 // pred_check_branch
          %345 = sbr.rel (%p343) target = $region52
        $region51: #{tpu_custom_call.1} parent=47 // pred_region
          %s346 = sand.u32 %s124, 1
          %s347 = scalar_lea.sflag [#allocation4], %s346
          %s348 = sand.u32 %s124, 1
          %s349 = smul.addr %s348, 8
          %s350 = scalar_lea.vmem [#allocation5], %s349
          %351 = dma.done %s347, 128
        $region52: #{tpu_custom_call.1} parent=47 // pred_fallthru
          _
      $region48: #{tpu_custom_call.1} parent=5 // pred_fallthru
        _
    $region6: #{tpu_custom_call.1} parent=1 // loop_footer
      %s20 = sadd.s32 1, %s16
    $region7: #{tpu_custom_call.1} parent=1 // loop_footer_branch
      %15 = sbr.rel target = $region3
    $region8: #{tpu_custom_call.1} parent=1 // loop_exit
      _
    %352 = vsyncpa [#allocation3], 1
    %s353 = scalar_lea.sflag [#allocation3], 1
    %354 = vsyncpa %s353, 1
    %355 = vsyncpa [#allocation4], 1
    %s356 = scalar_lea.sflag [#allocation4], 1
    %357 = vsyncpa %s356, 1

</llo_original>
